<compile_context>
chip_gen: v7x
topology: tpu7x:2x2x1
jax: 0.10.0
libtpu: 0.0.40
codegen_flags: <defaults>
</compile_context>

<pallas_src>
import functools

import jax
import jax.numpy as jnp
from jax.experimental import pallas as pl
from jax.experimental.pallas import tpu as pltpu


def _f(x):
    # The function wrapped by Lambda.  Chosen deterministically in-script.
    return jnp.tanh(x)


def _lambda_kernel(x_ref, o_ref, *, compute_dtype):
    # Elementwise f on one (tile_r, lanes) VMEM tile.
    x = x_ref[...]
    y = _f(x.astype(compute_dtype))
    o_ref[...] = y.astype(o_ref.dtype)


# ~4 MiB per block: big enough to amortize ~0.35us/step grid overhead; the
# (in + out) x 2 double buffers total 16 MiB, within the 32 MiB scoped VMEM
# limit below on all of v5e/v6e/v7x.
_TARGET_BLOCK_BYTES = 4 << 20
_VMEM_LIMIT_BYTES = 32 << 20

# Below this element count the pallas_call launch / single-step pipeline
# overhead dominates and blocking XLA fusion is a net loss; just use jnp.tanh.
_MIN_PALLAS_ELEMS = 2048

_LANE_CANDIDATES = (1024, 512, 256, 128)
_FLOAT_DTYPES = (jnp.float32, jnp.bfloat16, jnp.float16)


def _choose_lanes(n):
    """Largest lane-dense width (multiple of 128) that exactly divides n."""
    for cand in _LANE_CANDIDATES:
        if n % cand == 0 and n >= cand * 8:
            return cand
    for cand in _LANE_CANDIDATES:
        if n % cand == 0:
            return cand
    return 128  # unreachable: callers guarantee n % 128 == 0


def _choose_tile_rows(rows, lanes, itemsize):
    """Rows per block: ~_TARGET_BLOCK_BYTES, sublane-aligned for the dtype."""
    # Sublane multiple by packing: f32 -> 8, bf16/f16 -> 16, int8/fp8 -> 32.
    sub = {4: 8, 2: 16, 1: 32}.get(itemsize, 8)
    tile_r = _TARGET_BLOCK_BYTES // (lanes * itemsize)
    tile_r = max(sub, (tile_r // sub) * sub)
    if rows <= tile_r:
        # Full-extent block along the sublane axis is always a legal block
        # shape, even when `rows` is not a multiple of the sublane count.
        return rows
    return tile_r


def _supports_native_narrow_float():
    """True on chips with bf16 VPU/EUP (v6e, v7x); False on v5e and older."""
    try:
        kind = jax.devices()[0].device_kind.lower()
    except Exception:  # pragma: no cover - defensive; default to safe upcast
        return False
    return not any(tag in kind for tag in ("v2", "v3", "v4", "v5"))


def lambda_forward(x):
    """Pallas equivalent of Lambda(f).forward(x) with f = tanh.

    Accepts any shape; internally flattens to a lane-dense (rows, lanes) slab
    so the last dim maps onto the 128-lane vreg axis, applies f on ~4 MiB
    VMEM tiles, and reshapes back.
    """
    orig_shape = x.shape
    orig_dtype = x.dtype
    n = int(x.size)

    # Small-size / unsupported-dtype fallback: plain jnp path (XLA fuses it).
    if n < _MIN_PALLAS_ELEMS or orig_dtype not in _FLOAT_DTYPES:
        return _f(x)

    itemsize = jnp.dtype(orig_dtype).itemsize
    compute_dtype = (
        orig_dtype
        if (orig_dtype == jnp.float32 or _supports_native_narrow_float())
        else jnp.float32
    )

    flat = x.reshape(-1)

    # Only the 128-lane alignment requires padding; the row (sublane) axis is
    # handled by a ragged grid (pl.cdiv) with Pallas masking the last block.
    padded = (n % 128) != 0
    if padded:
        # TODO(synk): a masked tail store (broadcasted_iota mask +
        # pltpu.store) on the last grid step would remove this HBM round trip
        # for non-lane-aligned sizes entirely; tanh(0)=0 on the pad region is
        # sliced off below, so semantics are unaffected.
        n_pad = ((n + 127) // 128) * 128
        flat = jnp.pad(flat, (0, n_pad - n))

    n_eff = flat.shape[0]
    lanes = _choose_lanes(n_eff)
    rows = n_eff // lanes
    tile_r = _choose_tile_rows(rows, lanes, itemsize)

    x2d = flat.reshape(rows, lanes)
    grid = (pl.cdiv(rows, tile_r),)

    kernel = functools.partial(_lambda_kernel, compute_dtype=compute_dtype)

    out2d = pl.pallas_call(
        kernel,
        out_shape=jax.ShapeDtypeStruct((rows, lanes), orig_dtype),
        grid_spec=pltpu.PrefetchScalarGridSpec(
            num_scalar_prefetch=0,
            grid=grid,
            in_specs=[pl.BlockSpec((tile_r, lanes), lambda i: (i, 0))],
            out_specs=pl.BlockSpec((tile_r, lanes), lambda i: (i, 0)),
        ),
        compiler_params=pltpu.CompilerParams(
            dimension_semantics=("parallel",),
            vmem_limit_bytes=_VMEM_LIMIT_BYTES,
        ),
    )(x2d)

    out_flat = out2d.reshape(-1)
    if padded:
        out_flat = out_flat[:n]
    return out_flat.reshape(orig_shape)


if __name__ == "__main__":
    key = jax.random.PRNGKey(0)
    k1, k2, k3, k4 = jax.random.split(key, 4)

    # 1) NCHW input (batch=2, channels=4, spatial=16x16): lane-aligned,
    #    pad-free Pallas path.
    x1 = jax.random.normal(k1, (2, 4, 16, 16), dtype=jnp.float32)
    o1 = jax.block_until_ready(lambda_forward(x1))
    assert o1.shape == x1.shape and o1.dtype == x1.dtype
    assert jnp.allclose(o1, _f(x1), atol=1e-6, rtol=1e-6)

    # 2) Tiny odd shape: small-size fallback path (pure jnp).
    x2 = jax.random.normal(k2, (2, 3, 7, 5), dtype=jnp.float32)
    o2 = jax.block_until_ready(lambda_forward(x2))
    assert o2.shape == x2.shape and o2.dtype == x2.dtype
    assert jnp.allclose(o2, _f(x2), atol=1e-6, rtol=1e-6)

    # 3) Larger, non-128-aligned shape: lane-padded Pallas path.
    x3 = jax.random.normal(k3, (3, 5, 11, 13), dtype=jnp.float32)
    o3 = jax.block_until_ready(lambda_forward(x3))
    assert o3.shape == x3.shape and o3.dtype == x3.dtype
    assert jnp.allclose(o3, _f(x3), atol=1e-6, rtol=1e-6)

    # 4) bf16 input: narrow-float Pallas path (native bf16 on v6e/v7x,
    #    f32 upcast on v5e).
    x4 = jax.random.normal(k4, (2, 4, 16, 16), dtype=jnp.bfloat16)
    o4 = jax.block_until_ready(lambda_forward(x4))
    assert o4.shape == x4.shape and o4.dtype == x4.dtype
    assert jnp.allclose(
        o4.astype(jnp.float32), _f(x4.astype(jnp.float32)), atol=2e-2, rtol=2e-2
    )

    print("KERNEL_OK")
</pallas_src>

<mosaic_0001>
module attributes {stable_mosaic.version = 11 : i64} {
  func.func @_lambda_kernel(%arg0: i32, %arg1: memref<8x256xf32, #tpu.memory_space<vmem>>, %arg2: memref<8x256xf32, #tpu.memory_space<vmem>>) attributes {dimension_semantics = [#tpu.dimension_semantics<parallel>], iteration_bounds = array<i64: 1>, scalar_prefetch = 0 : i64, scratch_operands = 0 : i64, tpu.core_type = #tpu.core_type<tc>, window_params = [{transform_indices = @transform_0, window_bounds = array<i64: 8, 256>}, {transform_indices = @transform_1, window_bounds = array<i64: 8, 256>}]} {
    %c0 = arith.constant 0 : index
    %c0_0 = arith.constant 0 : index
    %0 = vector.load %arg1[%c0, %c0_0] : memref<8x256xf32, #tpu.memory_space<vmem>>, vector<8x256xf32>
    %1 = math.tanh %0 : vector<8x256xf32>
    %c0_1 = arith.constant 0 : index
    %c0_2 = arith.constant 0 : index
    %2 = vector.load %arg2[%c0_1, %c0_2] : memref<8x256xf32, #tpu.memory_space<vmem>>, vector<8x256xf32>
    tpu.vector_store %arg2[%c0_1, %c0_2], %1 {strides = array<i32>} : memref<8x256xf32, #tpu.memory_space<vmem>>, vector<8x256xf32>,
    return
  }
  func.func @transform_0(%arg0: i32) -> (i32, i32) {
    %c0_i32 = arith.constant 0 : i32
    %c0_i32_0 = arith.constant 0 : i32
    return %arg0, %c0_i32 : i32, i32
  }
  func.func @transform_1(%arg0: i32) -> (i32, i32) {
    %c0_i32 = arith.constant 0 : i32
    %c0_i32_0 = arith.constant 0 : i32
    return %arg0, %c0_i32 : i32, i32
  }
}

</mosaic_0001>

<llo_original>
// kernel: tpu_custom_call.1
$region0: #{tpu_custom_call.1}
  #allocation0 [shape = 'u32[]', space=smem, size = 0x4, offset = 0x4, fixed_abs, tag = 'smem constant byte address 0x4 - core index']
  #allocation1 [shape = 'u32[144,128]{1,0:T(1,128)}', space=vmem, size = 0x12000, scoped, tag = 'internal scratch']
  %s0 = inlined_call_operand.hbm [shape: f32[8,256], index: 0, kind: input, shape index: {}]
  %s1 = inlined_call_operand.hbm [shape: f32[8,256], index: 1, kind: output, shape index: {}]
  %s2 = sld [smem:[#allocation0]]
  $region18: #{tpu_custom_call.1} parent=0
    _
  %s4 = ssub.s32 1, %s2
  %s5 = scalar_select 0, %s4, %s2
  $region1: #{tpu_custom_call.1} parent=0
    #allocation2 [shape = 'u8[8192]{0}', space=vmem, size = 0x2000, scoped, tag = 'input window, operand 0, single buffered']
    #allocation3 [shape = 's32[1]{0}', space=sflag, size = 0x4, scoped, tag = 'scoped memory for tpu_custom_call.1']
    #allocation4 [shape = 's32[1]{0}', space=sflag, size = 0x4, scoped, tag = 'scoped memory for tpu_custom_call.1']
    #allocation5 [shape = 'u8[8192]{0}', space=vmem, size = 0x2000, scoped, tag = 'output window, operand 0, single buffered']
    %6 = vsyncpa [#allocation3], 0
    %7 = vsyncpa [#allocation4], 0
    // Predicated region
    $region2: #{tpu_custom_call.1} parent=1 // pred_check
      _
    $region3: #{tpu_custom_call.1} parent=1 // pred_check_branch
      %9 = sbr.rel (0) target = $region5
    $region4: #{tpu_custom_call.1} parent=1 // pred_region
      %s11 = ssub.s32 256, 256
      %12 = vsyncadd [#allocation3], %s11
      %s14 = sshll.u32 [#allocation2], 4
      %s15 = int_to_ptr.vmem [resolvable:$true] %s14
      %17 = dma.hbm_to_vmem [thread:$0]  %s0, 256, %s15, [#allocation3]
    $region5: #{tpu_custom_call.1} parent=1 // pred_fallthru
      _
    // Predicated region
    $region6: #{tpu_custom_call.1} parent=1 // pred_check
      _
    $region7: #{tpu_custom_call.1} parent=1 // pred_check_branch
      %19 = sbr.rel (0) target = $region9
    $region8: #{tpu_custom_call.1} parent=1 // pred_region
      %20 = dma.done [#allocation3], 256
    $region9: #{tpu_custom_call.1} parent=1 // pred_fallthru
      _
    %v21 = vld [vmem:[#allocation2] sm:$0xff]
    %v22 = vld [vmem:[#allocation2 + $0x8] sm:$0xff]
    %v23 = vtanh.pop %v21
    %v24 = vtanh.pop %v22
    %25 = vst [vmem:[#allocation5] sm:$0xff] %v23
    %26 = vst [vmem:[#allocation5 + $0x8] sm:$0xff] %v24
    // Predicated region
    $region10: #{tpu_custom_call.1} parent=1 // pred_check
      _
    $region11: #{tpu_custom_call.1} parent=1 // pred_check_branch
      %28 = sbr.rel (0) target = $region13
    $region12: #{tpu_custom_call.1} parent=1 // pred_region
      %s30 = ssub.s32 256, 256
      %31 = vsyncadd [#allocation4], %s30
      %s33 = sshll.u32 [#allocation5], 4
      %s34 = int_to_ptr.vmem [resolvable:$true] %s33
      %36 = dma.vmem_to_hbm [thread:$0]  %s34, 256, %s1, [#allocation4]
    $region13: #{tpu_custom_call.1} parent=1 // pred_fallthru
      _
    // Predicated region
    $region14: #{tpu_custom_call.1} parent=1 // pred_check
      _
    $region15: #{tpu_custom_call.1} parent=1 // pred_check_branch
      %38 = sbr.rel (0) target = $region17
    $region16: #{tpu_custom_call.1} parent=1 // pred_region
      %39 = dma.done [#allocation4], 256
    $region17: #{tpu_custom_call.1} parent=1 // pred_fallthru
      _
    %40 = vsyncpa [#allocation3], 1
    %41 = vsyncpa [#allocation4], 1

</llo_original>
